<compile_context>
chip_gen: v6e
topology: v6e:2x2x1
jax: 0.10.0
libtpu: 0.0.40
codegen_flags: <defaults>
</compile_context>

<pallas_src>
import functools

import jax
import jax.numpy as jnp
from jax.experimental import pallas as pl
from jax.experimental.pallas import tpu as pltpu

LN_EPS = 1e-12
MASK_BIAS = -1e9                      # finite additive mask bias (HF-style)
VMEM_LIMIT = 48 * 1024 * 1024         # fits v5e/v6e (128 MiB) and v7x (64 MiB)


# ----------------------------------------------------------------------------- helpers
def _row_tile(n):
    for t in (512, 256, 128, 64, 32, 16, 8):
        if n % t == 0:
            return t
    return n


def _col_tile(n):
    for t in (512, 256, 128):
        if n % t == 0:
            return t
    return n


def _layer_norm(x, gamma, beta):
    # fp32 math, biased variance, eps=1e-12 (matches torch.nn.LayerNorm)
    mu = jnp.mean(x, axis=-1, keepdims=True)
    var = jnp.mean((x - mu) ** 2, axis=-1, keepdims=True)
    return (x - mu) * jax.lax.rsqrt(var + LN_EPS) * gamma + beta


def _cparams(sem=None):
    return pltpu.CompilerParams(dimension_semantics=sem, vmem_limit_bytes=VMEM_LIMIT)


# ----------------------------------------------------------------------------- kernels
def embed_ln_kernel(word_ref, tok_ref, pos_ref, g_ref, b_ref, out_ref):
    x = word_ref[...] + tok_ref[...] + pos_ref[...]
    out_ref[...] = _layer_norm(x, g_ref[...], b_ref[...])


def qkv_kernel(scale, x_ref, wq_ref, bq_ref, wk_ref, bk_ref, wv_ref, bv_ref,
               q_ref, k_ref, v_ref):
    xb = x_ref[...].astype(jnp.bfloat16)
    q = jnp.dot(xb, wq_ref[...], preferred_element_type=jnp.float32) + bq_ref[...]
    k = jnp.dot(xb, wk_ref[...], preferred_element_type=jnp.float32) + bk_ref[...]
    v = jnp.dot(xb, wv_ref[...], preferred_element_type=jnp.float32) + bv_ref[...]
    q_ref[...] = (q * scale).astype(jnp.bfloat16)   # fold head_size**-0.5 into Q once
    k_ref[...] = k.astype(jnp.bfloat16)
    v_ref[...] = v.astype(jnp.bfloat16)


def attn_core_kernel(q_ref, k_ref, v_ref, bias_ref, ctx_ref):
    # q/k/v: (H, T, hs) bf16 for one batch element; bias: (1, 1, T) fp32 key mask.
    q = q_ref[...]
    k = k_ref[...]
    v = v_ref[...]
    s = jnp.einsum('hqd,hkd->hqk', q, k, preferred_element_type=jnp.float32)
    s = s + bias_ref[...]                                 # additive key-mask bias
    m = jnp.max(s, axis=-1, keepdims=True)
    p = jnp.exp(s - m)
    denom = jnp.sum(p, axis=-1, keepdims=True)
    p = p * pl.reciprocal(denom, approx=True)             # EUP reciprocal
    ctx = jnp.einsum('hqk,hkd->hqd', p.astype(jnp.bfloat16), v,
                     preferred_element_type=jnp.float32)
    ctx_ref[...] = ctx.astype(jnp.bfloat16)


def proj_ln_kernel(ctx_ref, res_ref, w_ref, b_ref, g_ref, beta_ref, out_ref):
    # BertSelfOutput: dense -> (+residual) -> LayerNorm
    y = jnp.dot(ctx_ref[...], w_ref[...], preferred_element_type=jnp.float32) + b_ref[...]
    out_ref[...] = _layer_norm(y + res_ref[...], g_ref[...], beta_ref[...])


def ffn_kernel(x_ref, wi_ref, bi_ref, wd_ref, bd_ref, g_ref, beta_ref, out_ref, acc_ref):
    # BertIntermediate + BertOutput, tiled over the intermediate dim (grid axis 1).
    j = pl.program_id(1)

    @pl.when(j == 0)
    def _():
        acc_ref[...] = jnp.zeros_like(acc_ref)

    xb = x_ref[...].astype(jnp.bfloat16)
    h = jnp.dot(xb, wi_ref[...], preferred_element_type=jnp.float32) + bi_ref[...]
    h = jax.nn.gelu(h, approximate=False)                 # exact GELU, fp32
    acc_ref[...] += jnp.dot(h.astype(jnp.bfloat16), wd_ref[...],
                            preferred_element_type=jnp.float32)

    @pl.when(j == pl.num_programs(1) - 1)
    def _():
        out_ref[...] = _layer_norm(acc_ref[...] + bd_ref[...] + x_ref[...],
                                   g_ref[...], beta_ref[...])


def pooler_cls_kernel(x_ref, wp_ref, bp_ref, wc_ref, bc_ref, logits_ref):
    xb = x_ref[...].astype(jnp.bfloat16)
    pooled = jnp.tanh(
        jnp.dot(xb, wp_ref[...], preferred_element_type=jnp.float32) + bp_ref[...])
    logits_ref[...] = (
        jnp.dot(pooled.astype(jnp.bfloat16), wc_ref[...],
                preferred_element_type=jnp.float32) + bc_ref[...])


# ----------------------------------------------------------------------------- wrapper
def bert_for_sequence_classification(params, cfg, input_ids, token_type_ids, attention_mask):
    B, T = input_ids.shape
    C = cfg["emb_size"]
    I = cfg["intermediate_size"]
    N = B * T
    tm = _row_tile(N)          # row tile of the flattened activation
    ti = _col_tile(I)          # tile of the FFN intermediate dimension

    row_spec = pl.BlockSpec((tm, C), lambda r: (r, 0))
    vec_spec = pl.BlockSpec((1, C), lambda r: (0, 0))
    cc_spec = pl.BlockSpec((C, C), lambda r: (0, 0))

    # ---- embeddings (gathers stay in XLA glue; add + LN fused & row-tiled) ----
    word = jnp.take(params["word_emb"], input_ids, axis=0).reshape(N, C)
    tok = jnp.take(params["tok_emb"], token_type_ids, axis=0).reshape(N, C)
    pos = jnp.take(params["pos_emb"], jnp.arange(T), axis=0)
    pos = jnp.broadcast_to(pos[None, :, :], (B, T, C)).reshape(N, C)

    x = pl.pallas_call(
        embed_ln_kernel,
        grid=(N // tm,),
        in_specs=[row_spec, row_spec, row_spec, vec_spec, vec_spec],
        out_specs=row_spec,
        out_shape=jax.ShapeDtypeStruct((N, C), jnp.float32),
        compiler_params=_cparams(("parallel",)),
    )(word, tok, pos, params["emb_ln_g"], params["emb_ln_b"])
    # TODO(synk): dropout is a no-op (inference / eval mode).

    # Additive key mask: 0 where attend-able, -1e9 where padded (finite -> no NaN).
    mask_bias = jnp.where(attention_mask > 0, 0.0, MASK_BIAS).astype(jnp.float32)
    mask_bias = mask_bias.reshape(B, 1, 1, T)

    # ---- encoder layers ----
    for layer_i, lp in enumerate(params["layers"]):
        H = cfg["n_heads"][layer_i]
        assert C % H == 0, "emb_size must be divisible by n_heads"
        hs = C // H
        scale = float(hs) ** -0.5

        # QKV projection: grid over row tiles, weights VMEM-resident bf16.
        q, k, v = pl.pallas_call(
            functools.partial(qkv_kernel, scale),
            grid=(N // tm,),
            in_specs=[row_spec, cc_spec, vec_spec, cc_spec, vec_spec, cc_spec, vec_spec],
            out_specs=[row_spec, row_spec, row_spec],
            out_shape=[jax.ShapeDtypeStruct((N, C), jnp.bfloat16)] * 3,
            compiler_params=_cparams(("parallel",)),
        )(x, lp["wq"], lp["bq"], lp["wk"], lp["bk"], lp["wv"], lp["bv"])

        # Head split is pure layout plumbing -> XLA glue.
        def to_heads(t):
            return t.reshape(B, T, H, hs).transpose(0, 2, 1, 3)   # (B, H, T, hs)

        qh, kh, vh = to_heads(q), to_heads(k), to_heads(v)

        head_spec = pl.BlockSpec((None, H, T, hs), lambda b: (b, 0, 0, 0))
        bias_spec = pl.BlockSpec((None, 1, 1, T), lambda b: (b, 0, 0, 0))

        # Attention core: grid over batch, batched einsums over the head axis.
        ctx = pl.pallas_call(
            attn_core_kernel,
            grid=(B,),
            in_specs=[head_spec, head_spec, head_spec, bias_spec],
            out_specs=head_spec,
            out_shape=jax.ShapeDtypeStruct((B, H, T, hs), jnp.bfloat16),
            compiler_params=_cparams(("parallel",)),
        )(qh, kh, vh, mask_bias)

        ctx_flat = ctx.transpose(0, 2, 1, 3).reshape(N, C)

        # Output projection + residual + LayerNorm (row-tiled).
        att = pl.pallas_call(
            proj_ln_kernel,
            grid=(N // tm,),
            in_specs=[row_spec, row_spec, cc_spec, vec_spec, vec_spec, vec_spec],
            out_specs=row_spec,
            out_shape=jax.ShapeDtypeStruct((N, C), jnp.float32),
            compiler_params=_cparams(("parallel",)),
        )(ctx_flat, x, lp["wo"], lp["bo"], lp["ln1_g"], lp["ln1_b"])

        # FFN: tiled over rows (parallel) and intermediate dim (arbitrary reduction).
        x = pl.pallas_call(
            ffn_kernel,
            grid=(N // tm, I // ti),
            in_specs=[
                pl.BlockSpec((tm, C), lambda r, j: (r, 0)),
                pl.BlockSpec((C, ti), lambda r, j: (0, j)),
                pl.BlockSpec((1, ti), lambda r, j: (0, j)),
                pl.BlockSpec((ti, C), lambda r, j: (j, 0)),
                pl.BlockSpec((1, C), lambda r, j: (0, 0)),
                pl.BlockSpec((1, C), lambda r, j: (0, 0)),
                pl.BlockSpec((1, C), lambda r, j: (0, 0)),
            ],
            out_specs=pl.BlockSpec((tm, C), lambda r, j: (r, 0)),
            out_shape=jax.ShapeDtypeStruct((N, C), jnp.float32),
            scratch_shapes=[pltpu.VMEM((tm, C), jnp.float32)],
            compiler_params=_cparams(("parallel", "arbitrary")),
        )(att, lp["wi"], lp["bi"], lp["wd"], lp["bd"], lp["ln2_g"], lp["ln2_b"])

    # ---- pooler + classifier (tiny; single invocation) ----
    first_tok = x.reshape(B, T, C)[:, 0, :]
    logits = pl.pallas_call(
        pooler_cls_kernel,
        out_shape=jax.ShapeDtypeStruct((B, cfg["n_classes"]), jnp.float32),
        compiler_params=_cparams(),
    )(first_tok, params["pool_w"], params["pool_b"], params["cls_w"], params["cls_b"])
    return logits


# ----------------------------------------------------------------------------- params
def init_params(key, cfg):
    C = cfg["emb_size"]
    I = cfg["intermediate_size"]
    std = 0.02
    keys = iter(jax.random.split(key, 16 + 16 * cfg["n_layers"]))

    def normal(shape, dtype=jnp.float32):
        return (jax.random.normal(next(keys), shape, jnp.float32) * std).astype(dtype)

    word_emb = normal((cfg["vocab_size"], C))
    word_emb = word_emb.at[cfg["pad_token_id"]].set(0.0)   # padding_idx row zeroed

    params = {
        "word_emb": word_emb,
        "pos_emb": normal((cfg["max_seq_len"], C)),
        "tok_emb": normal((2, C)),
        "emb_ln_g": jnp.ones((1, C), jnp.float32),
        "emb_ln_b": jnp.zeros((1, C), jnp.float32),
        # matmul weights stored bf16 (fp32 accumulation in-kernel); biases/LN fp32.
        "pool_w": normal((C, C), jnp.bfloat16),
        "pool_b": jnp.zeros((1, C), jnp.float32),
        "cls_w": normal((C, cfg["n_classes"]), jnp.bfloat16),
        "cls_b": jnp.zeros((1, cfg["n_classes"]), jnp.float32),
        "layers": [],
    }
    for _ in range(cfg["n_layers"]):
        lp = {
            "wq": normal((C, C), jnp.bfloat16), "bq": jnp.zeros((1, C), jnp.float32),
            "wk": normal((C, C), jnp.bfloat16), "bk": jnp.zeros((1, C), jnp.float32),
            "wv": normal((C, C), jnp.bfloat16), "bv": jnp.zeros((1, C), jnp.float32),
            "wo": normal((C, C), jnp.bfloat16), "bo": jnp.zeros((1, C), jnp.float32),
            "ln1_g": jnp.ones((1, C), jnp.float32),
            "ln1_b": jnp.zeros((1, C), jnp.float32),
            "wi": normal((C, I), jnp.bfloat16), "bi": jnp.zeros((1, I), jnp.float32),
            "wd": normal((I, C), jnp.bfloat16), "bd": jnp.zeros((1, C), jnp.float32),
            "ln2_g": jnp.ones((1, C), jnp.float32),
            "ln2_b": jnp.zeros((1, C), jnp.float32),
        }
        params["layers"].append(lp)
    return params


# ----------------------------------------------------------------------------- main
if __name__ == "__main__":
    cfg = dict(
        max_seq_len=16,
        vocab_size=100,
        n_layers=2,
        n_heads=(2, 2),
        emb_size=32,
        intermediate_size=128,
        n_classes=2,
        pad_token_id=0,
    )
    B, T = 2, 8

    key = jax.random.PRNGKey(0)
    kp, kid, kmask = jax.random.split(key, 3)
    params = init_params(kp, cfg)

    input_ids = jax.random.randint(kid, (B, T), 1, cfg["vocab_size"], dtype=jnp.int32)
    token_type_ids = jnp.zeros((B, T), dtype=jnp.int32)
    # attention mask: first token always valid, last two tokens of batch 1 padded out
    attention_mask = jnp.ones((B, T), dtype=jnp.int32)
    attention_mask = attention_mask.at[1, T - 2:].set(0)

    logits = bert_for_sequence_classification(
        params, cfg, input_ids, token_type_ids, attention_mask)
    jax.block_until_ready(logits)
    assert logits.shape == (B, cfg["n_classes"])
    assert bool(jnp.all(jnp.isfinite(logits)))
    print("KERNEL_OK")
</pallas_src>

<mosaic_0001>
module attributes {stable_mosaic.version = 11 : i64} {
  func.func @embed_ln_kernel(%arg0: i32, %arg1: memref<16x32xf32, #tpu.memory_space<vmem>>, %arg2: memref<16x32xf32, #tpu.memory_space<vmem>>, %arg3: memref<16x32xf32, #tpu.memory_space<vmem>>, %arg4: memref<1x32xf32, #tpu.memory_space<vmem>>, %arg5: memref<1x32xf32, #tpu.memory_space<vmem>>, %arg6: memref<16x32xf32, #tpu.memory_space<vmem>>) attributes {dimension_semantics = [#tpu.dimension_semantics<parallel>], iteration_bounds = array<i64: 1>, scalar_prefetch = 0 : i64, scratch_operands = 0 : i64, tpu.core_type = #tpu.core_type<tc>, window_params = [{transform_indices = @transform_0, window_bounds = array<i64: 16, 32>}, {transform_indices = @transform_1, window_bounds = array<i64: 16, 32>}, {transform_indices = @transform_2, window_bounds = array<i64: 16, 32>}, {pipeline_mode = #tpu.pipeline_mode<synchronous>, transform_indices = @transform_3, window_bounds = array<i64: 1, 32>}, {pipeline_mode = #tpu.pipeline_mode<synchronous>, transform_indices = @transform_4, window_bounds = array<i64: 1, 32>}, {transform_indices = @transform_5, window_bounds = array<i64: 16, 32>}]} {
    %c0 = arith.constant 0 : index
    %c0_0 = arith.constant 0 : index
    %0 = vector.load %arg1[%c0, %c0_0] : memref<16x32xf32, #tpu.memory_space<vmem>>, vector<16x32xf32>
    %c0_1 = arith.constant 0 : index
    %c0_2 = arith.constant 0 : index
    %1 = vector.load %arg2[%c0_1, %c0_2] : memref<16x32xf32, #tpu.memory_space<vmem>>, vector<16x32xf32>
    %2 = arith.addf %0, %1 : vector<16x32xf32>
    %c0_3 = arith.constant 0 : index
    %c0_4 = arith.constant 0 : index
    %3 = vector.load %arg3[%c0_3, %c0_4] : memref<16x32xf32, #tpu.memory_space<vmem>>, vector<16x32xf32>
    %4 = arith.addf %2, %3 : vector<16x32xf32>
    %c0_5 = arith.constant 0 : index
    %c0_6 = arith.constant 0 : index
    %5 = vector.load %arg4[%c0_5, %c0_6] : memref<1x32xf32, #tpu.memory_space<vmem>>, vector<1x32xf32>
    %c0_7 = arith.constant 0 : index
    %c0_8 = arith.constant 0 : index
    %6 = vector.load %arg5[%c0_7, %c0_8] : memref<1x32xf32, #tpu.memory_space<vmem>>, vector<1x32xf32>
    %cst = arith.constant dense<0.000000e+00> : vector<16xf32>
    %7 = vector.multi_reduction <add>, %4, %cst [1] : vector<16x32xf32> to vector<16xf32>
    %8 = vector.shape_cast %7 : vector<16xf32> to vector<16x1xf32>
    %cst_9 = arith.constant 3.200000e+01 : f32
    %9 = vector.broadcast %cst_9 : f32 to vector<16x1xf32>
    %10 = arith.divf %8, %9 : vector<16x1xf32>
    %11 = vector.broadcast %10 : vector<16x1xf32> to vector<16x32xf32>
    %12 = arith.subf %4, %11 : vector<16x32xf32>
    %13 = arith.mulf %12, %12 : vector<16x32xf32>
    %cst_10 = arith.constant dense<0.000000e+00> : vector<16xf32>
    %14 = vector.multi_reduction <add>, %13, %cst_10 [1] : vector<16x32xf32> to vector<16xf32>
    %15 = vector.shape_cast %14 : vector<16xf32> to vector<16x1xf32>
    %cst_11 = arith.constant 3.200000e+01 : f32
    %16 = vector.broadcast %cst_11 : f32 to vector<16x1xf32>
    %17 = arith.divf %15, %16 : vector<16x1xf32>
    %18 = vector.broadcast %10 : vector<16x1xf32> to vector<16x32xf32>
    %19 = arith.subf %4, %18 : vector<16x32xf32>
    %cst_12 = arith.constant 9.99999996E-13 : f32
    %20 = vector.broadcast %cst_12 : f32 to vector<16x1xf32>
    %21 = arith.addf %17, %20 : vector<16x1xf32>
    %22 = math.rsqrt %21 : vector<16x1xf32>
    %23 = vector.broadcast %22 : vector<16x1xf32> to vector<16x32xf32>
    %24 = arith.mulf %19, %23 : vector<16x32xf32>
    %25 = vector.broadcast %5 : vector<1x32xf32> to vector<16x32xf32>
    %26 = arith.mulf %24, %25 : vector<16x32xf32>
    %27 = vector.broadcast %6 : vector<1x32xf32> to vector<16x32xf32>
    %28 = arith.addf %26, %27 : vector<16x32xf32>
    %c0_13 = arith.constant 0 : index
    %c0_14 = arith.constant 0 : index
    %29 = vector.load %arg6[%c0_13, %c0_14] : memref<16x32xf32, #tpu.memory_space<vmem>>, vector<16x32xf32>
    tpu.vector_store %arg6[%c0_13, %c0_14], %28 {strides = array<i32>} : memref<16x32xf32, #tpu.memory_space<vmem>>, vector<16x32xf32>,
    return
  }
  func.func @transform_0(%arg0: i32) -> (i32, i32) {
    %c0_i32 = arith.constant 0 : i32
    %c0_i32_0 = arith.constant 0 : i32
    return %arg0, %c0_i32 : i32, i32
  }
  func.func @transform_1(%arg0: i32) -> (i32, i32) {
    %c0_i32 = arith.constant 0 : i32
    %c0_i32_0 = arith.constant 0 : i32
    return %arg0, %c0_i32 : i32, i32
  }
  func.func @transform_2(%arg0: i32) -> (i32, i32) {
    %c0_i32 = arith.constant 0 : i32
    %c0_i32_0 = arith.constant 0 : i32
    return %arg0, %c0_i32 : i32, i32
  }
  func.func @transform_3(%arg0: i32) -> (i32, i32) {
    %c0_i32 = arith.constant 0 : i32
    %c0_i32_0 = arith.constant 0 : i32
    %c0_i32_1 = arith.constant 0 : i32
    return %c0_i32, %c0_i32_0 : i32, i32
  }
  func.func @transform_4(%arg0: i32) -> (i32, i32) {
    %c0_i32 = arith.constant 0 : i32
    %c0_i32_0 = arith.constant 0 : i32
    %c0_i32_1 = arith.constant 0 : i32
    return %c0_i32, %c0_i32_0 : i32, i32
  }
  func.func @transform_5(%arg0: i32) -> (i32, i32) {
    %c0_i32 = arith.constant 0 : i32
    %c0_i32_0 = arith.constant 0 : i32
    return %arg0, %c0_i32 : i32, i32
  }
}

</mosaic_0001>

<llo_original>
// kernel: tpu_custom_call.1
$region0: #{tpu_custom_call.1}
  #allocation0 [shape = 'u32[]', space=smem, size = 0x4, offset = 0x4, fixed_abs, tag = 'smem constant byte address 0x4 - core index']
  #allocation1 [shape = 'u32[144,128]{1,0:T(1,128)}', space=vmem, size = 0x12000, scoped, tag = 'internal scratch']
  %s0 = inlined_call_operand.hbm [shape: f32[16,32], index: 0, kind: input, shape index: {}]
  %s1 = inlined_call_operand.hbm [shape: f32[16,32], index: 1, kind: input, shape index: {}]
  %s2 = inlined_call_operand.hbm [shape: f32[16,32], index: 2, kind: input, shape index: {}]
  %s3 = inlined_call_operand.vmem [shape: f32[1,32], index: 3, kind: input, shape index: {}]
  %s4 = inlined_call_operand.vmem [shape: f32[1,32], index: 4, kind: input, shape index: {}]
  %s5 = inlined_call_operand.hbm [shape: f32[16,32], index: 5, kind: output, shape index: {}]
  %s6 = sld [smem:[#allocation0]]
  $region42: #{tpu_custom_call.1} parent=0
    _
  %s8 = ssub.s32 1, %s6
  %s9 = scalar_select 0, %s8, %s6
  $region1: #{tpu_custom_call.1} parent=0
    #allocation2 [shape = 'u8[8192]{0}', space=vmem, size = 0x2000, scoped, tag = 'input window, operand 0, single buffered']
    #allocation3 [shape = 's32[1]{0}', space=sflag, size = 0x4, scoped, tag = 'scoped memory for tpu_custom_call.1']
    #allocation4 [shape = 's32[1]{0}', space=sflag, size = 0x4, scoped, tag = 'scoped memory for tpu_custom_call.1']
    #allocation5 [shape = 'u8[8192]{0}', space=vmem, size = 0x2000, scoped, tag = 'input window, operand 1, single buffered']
    #allocation6 [shape = 's32[1]{0}', space=sflag, size = 0x4, scoped, tag = 'scoped memory for tpu_custom_call.1']
    #allocation7 [shape = 'u8[8192]{0}', space=vmem, size = 0x2000, scoped, tag = 'input window, operand 2, single buffered']
    #allocation8 [shape = 'u8[8192]{0}', space=vmem, size = 0x2000, scoped, tag = 'output window, operand 0, single buffered']
    %10 = vsyncpa [#allocation3], 0
    %11 = vsyncpa [#allocation6], 0
    %12 = vsyncpa [#allocation4], 0
    // Predicated region
    $region2: #{tpu_custom_call.1} parent=1 // pred_check
      _
    $region3: #{tpu_custom_call.1} parent=1 // pred_check_branch
      %14 = sbr.rel (0) target = $region5
    $region4: #{tpu_custom_call.1} parent=1 // pred_region
      %s16 = ssub.s32 256, 256
      %17 = vsyncadd [#allocation3], %s16
      %s18 = sshll.u32 [#allocation2], 4
      %s19 = int_to_ptr.vmem [resolvable:$true] %s18
      %24 = dma.hbm_to_vmem [thread:$0]  %s0, 256, %s19, [#allocation3], 128, 128, 8
    $region5: #{tpu_custom_call.1} parent=1 // pred_fallthru
      _
    // Predicated region
    $region6: #{tpu_custom_call.1} parent=1 // pred_check
      _
    $region7: #{tpu_custom_call.1} parent=1 // pred_check_branch
      %26 = sbr.rel (0) target = $region9
    $region8: #{tpu_custom_call.1} parent=1 // pred_region
      %s28 = ssub.s32 256, 256
      %29 = vsyncadd [#allocation6], %s28
      %s30 = sshll.u32 [#allocation5], 4
      %s31 = int_to_ptr.vmem [resolvable:$true] %s30
      %36 = dma.hbm_to_vmem [thread:$0]  %s1, 256, %s31, [#allocation6], 128, 128, 8
    $region9: #{tpu_custom_call.1} parent=1 // pred_fallthru
      _
    // Predicated region
    $region10: #{tpu_custom_call.1} parent=1 // pred_check
      _
    $region11: #{tpu_custom_call.1} parent=1 // pred_check_branch
      %38 = sbr.rel (0) target = $region13
    $region12: #{tpu_custom_call.1} parent=1 // pred_region
      %s40 = ssub.s32 256, 256
      %41 = vsyncadd [#allocation6], %s40
      %s42 = sshll.u32 [#allocation7], 4
      %s43 = int_to_ptr.vmem [resolvable:$true] %s42
      %48 = dma.hbm_to_vmem [thread:$0]  %s2, 256, %s43, [#allocation6], 128, 128, 8
    $region13: #{tpu_custom_call.1} parent=1 // pred_fallthru
      _
    // Predicated region
    $region14: #{tpu_custom_call.1} parent=1 // pred_check
      _
    $region15: #{tpu_custom_call.1} parent=1 // pred_check_branch
      %50 = sbr.rel (0) target = $region17
    $region16: #{tpu_custom_call.1} parent=1 // pred_region
      _
    $region17: #{tpu_custom_call.1} parent=1 // pred_fallthru
      _
    // Predicated region
    $region18: #{tpu_custom_call.1} parent=1 // pred_check
      _
    $region19: #{tpu_custom_call.1} parent=1 // pred_check_branch
      %52 = sbr.rel (0) target = $region21
    $region20: #{tpu_custom_call.1} parent=1 // pred_region
      _
    $region21: #{tpu_custom_call.1} parent=1 // pred_fallthru
      _
    // Predicated region
    $region22: #{tpu_custom_call.1} parent=1 // pred_check
      _
    $region23: #{tpu_custom_call.1} parent=1 // pred_check_branch
      %54 = sbr.rel (0) target = $region25
    $region24: #{tpu_custom_call.1} parent=1 // pred_region
      %55 = dma.done [#allocation3], 256
    $region25: #{tpu_custom_call.1} parent=1 // pred_fallthru
      _
    // Predicated region
    $region26: #{tpu_custom_call.1} parent=1 // pred_check
      _
    $region27: #{tpu_custom_call.1} parent=1 // pred_check_branch
      %57 = sbr.rel (0) target = $region29
    $region28: #{tpu_custom_call.1} parent=1 // pred_region
      %58 = dma.done [#allocation6], 256
    $region29: #{tpu_custom_call.1} parent=1 // pred_fallthru
      _
    // Predicated region
    $region30: #{tpu_custom_call.1} parent=1 // pred_check
      _
    $region31: #{tpu_custom_call.1} parent=1 // pred_check_branch
      %60 = sbr.rel (0) target = $region33
    $region32: #{tpu_custom_call.1} parent=1 // pred_region
      %61 = dma.done [#allocation6], 256
    $region33: #{tpu_custom_call.1} parent=1 // pred_fallthru
      _
    %v62 = vld [vmem:[#allocation2] sm:$0xff]
    %v63 = vld [vmem:[#allocation2 + $0x8] sm:$0xff]
    %v64 = vld [vmem:[#allocation5] sm:$0xff]
    %v65 = vld [vmem:[#allocation5 + $0x8] sm:$0xff]
    %v66 = vadd.f32 %v62, %v64
    %v67 = vadd.f32 %v63, %v65
    %v68 = vld [vmem:[#allocation7] sm:$0xff]
    %v69 = vld [vmem:[#allocation7 + $0x8] sm:$0xff]
    %v70 = vadd.f32 %v66, %v68
    %v71 = vadd.f32 %v67, %v69
    %v72 = vld [vmem:[%s3] sm:$0x1]
    %v73 = vld [vmem:[%s4] sm:$0x1]
    %vm74 = vcmask 261120
    %v75 = vsel %vm74, %v70, 0.0
    %76 = vadd.xlane.f32.xlu0 %v75
    %v77 = vpop.xlane.xlu0 %76
    %v78 = vsel %vm74, %v71, 0.0
    %79 = vadd.xlane.f32.xlu0 %v78
    %v80 = vpop.xlane.xlu0 %79
    %v81 = vrcp.pop 32.0
    %v82 = vmul.f32 %v77, %v81
    %v83 = vmul.f32 %v80, %v81
    %v84 = vsub.f32 %v70, %v82
    %v85 = vsub.f32 %v71, %v83
    %v86 = vmul.f32 %v84, %v84
    %v87 = vmul.f32 %v85, %v85
    %v88 = vsel %vm74, %v86, 0.0
    %89 = vadd.xlane.f32.xlu0 %v88
    %v90 = vpop.xlane.xlu0 %89
    %v91 = vsel %vm74, %v87, 0.0
    %92 = vadd.xlane.f32.xlu0 %v91
    %v93 = vpop.xlane.xlu0 %92
    %v94 = vmul.f32 %v90, %v81
    %v95 = vmul.f32 %v93, %v81
    %v96 = vadd.f32 %v94, 1e-12
    %v97 = vadd.f32 %v95, 1e-12
    %v98 = vrsqrt.pop %v96
    %v99 = vrsqrt.pop %v97
    %v100 = vmul.f32 %v84, %v98
    %v101 = vmul.f32 %v85, %v99
    %v103 = vlaneseq
    %v104 = vshrl.u32 %v103, 7
    %v105 = vsub.s32 0, %v104
    %v106 = vrot.slane %v72, %v105
    %v108 = vmul.f32 %v100, %v106
    %v109 = vmul.f32 %v101, %v106
    %v111 = vlaneseq
    %v112 = vshrl.u32 %v111, 7
    %v113 = vsub.s32 0, %v112
    %v114 = vrot.slane %v73, %v113
    %v116 = vadd.f32 %v108, %v114
    %v117 = vadd.f32 %v109, %v114
    %118 = vst.msk [vmem:[#allocation8] sm:$0xff] %vm74, %v116
    %119 = vst.msk [vmem:[#allocation8 + $0x8] sm:$0xff] %vm74, %v117
    // Predicated region
    $region34: #{tpu_custom_call.1} parent=1 // pred_check
      _
    $region35: #{tpu_custom_call.1} parent=1 // pred_check_branch
      %121 = sbr.rel (0) target = $region37
    $region36: #{tpu_custom_call.1} parent=1 // pred_region
      %s123 = ssub.s32 256, 256
      %124 = vsyncadd [#allocation4], %s123
      %s125 = sshll.u32 [#allocation8], 4
      %s126 = int_to_ptr.vmem [resolvable:$true] %s125
      %131 = dma.vmem_to_hbm [thread:$0]  %s126, 256, %s5, [#allocation4], 128, 128, 8
    $region37: #{tpu_custom_call.1} parent=1 // pred_fallthru
      _
    // Predicated region
    $region38: #{tpu_custom_call.1} parent=1 // pred_check
      _
    $region39: #{tpu_custom_call.1} parent=1 // pred_check_branch
      %133 = sbr.rel (0) target = $region41
    $region40: #{tpu_custom_call.1} parent=1 // pred_region
      %134 = dma.done [#allocation4], 256
    $region41: #{tpu_custom_call.1} parent=1 // pred_fallthru
      _
    %135 = vsyncpa [#allocation3], 1
    %136 = vsyncpa [#allocation6], 1
    %137 = vsyncpa [#allocation4], 1

</llo_original>
